<compile_context>
chip_gen: v7x
topology: tpu7x:2x2x1
jax: 0.10.0
libtpu: 0.0.40
codegen_flags: <defaults>
</compile_context>

<pallas_src>
import jax
import jax.numpy as jnp
import numpy as np
from jax.experimental import pallas as pl
from jax.experimental.pallas import tpu as pltpu

# ---- config (mirrors `config.EMBEDDING_DIM`, `config.HIDDEN_SIZE`) ----
EMBEDDING_DIM = 32
HIDDEN_SIZE = 32
VOCAB_SIZE = 64
BATCH = 2
SEQ = 8

SUBLANES = 8     # pad batch up to full sublanes
LANES = 128      # pad the output vocab dim up to a multiple of the lane count


def rnn_lm_kernel(ids_ref,       # (1, T*Bp) int32  lane-dense time-major token ids, col r = t*Bp + b
                  emb_wih0_ref,  # (V, H)   f32     embedding @ Wih0   (folded at prep time)
                  b0_ref,        # (1, H)   f32     b_ih0 + b_hh0
                  b1_ref,        # (1, H)   f32     b_ih1 + b_hh1
                  wblock_ref,    # (2H, 2H) bf16    [[Whh0, Wih1], [0, Whh1]]
                  wout2_ref,     # (2H, Vp) bf16    [[0], [Wout]]      (lane-padded)
                  bout_ref,      # (1, Vp)  f32
                  out_ref):      # (Bp, Vp) f32
    BT = ids_ref.shape[1]
    V, H = emb_wih0_ref.shape
    Bp = out_ref.shape[0]
    T = BT // Bp

    # ---------------- prologue: everything here is OFF the serial recurrence chain ----------------
    ids = ids_ref[...]                                                   # (1, BT)
    iota_v = jax.lax.broadcasted_iota(jnp.int32, (V, BT), 0)
    # NOTE: out-of-range ids yield an all-zero one-hot column (zero embedding) instead of an error.
    one_hot_t = (iota_v == ids).astype(jnp.float32)                      # (V, BT)  transposed one-hot
    # embedding gather + layer-0 input projection in ONE matmul (contract dim 0 with dim 0)
    pre0 = jax.lax.dot_general(
        one_hot_t, emb_wih0_ref[...],
        dimension_numbers=(((0,), (0,)), ((), ())),
        preferred_element_type=jnp.float32) + b0_ref[...]                # (BT, H)

    # Staggered-wavefront additive term: row-block w is [pre0[w] | b1], with the right half zeroed
    # for w = 0 (so h2[-1] = 0) and the left half zeroed for the final wavefront w = T.
    zeros_blk = jnp.zeros((Bp, H), jnp.float32)
    left = jnp.concatenate([pre0, zeros_blk], axis=0)                    # ((T+1)*Bp, H)
    right = jnp.concatenate(
        [zeros_blk, jnp.broadcast_to(b1_ref[...], (T * Bp, H))], axis=0)  # ((T+1)*Bp, H)
    pre_cat = jnp.concatenate([left, right], axis=1)                     # ((T+1)*Bp, 2H)

    wblock = wblock_ref[...]                                             # (2H, 2H) bf16

    # ---------------- serial recurrence: layers staggered -> ONE matmul per wavefront --------------
    # S[w] = [h1[w] | h2[w-1]];  wavefront 0 needs no matmul (initial hidden state is zero).
    S = jnp.tanh(pre_cat[0:Bp, :])                                       # (Bp, 2H) f32
    for w in range(1, T + 1):                                            # T dependent MXU matmuls
        S = jnp.tanh(pre_cat[w * Bp:(w + 1) * Bp, :]
                     + jnp.dot(S.astype(jnp.bfloat16), wblock,
                               preferred_element_type=jnp.float32))

    # last_hidden = h2[T-1] = right half of S; top half of wout2 is zero, so a single
    # (Bp,2H)@(2H,Vp) matmul both extracts it and applies the final Linear (lane-dense store).
    out_ref[...] = (jnp.dot(S.astype(jnp.bfloat16), wout2_ref[...],
                            preferred_element_type=jnp.float32)
                    + bout_ref[...])


def prepare_kernel_params(params):
    """One-time layout prep (weight folding / stacking / padding); off the per-call path."""
    H = params["w_hh0"].shape[0]
    V = params["w_out"].shape[1]
    Vp = ((V + LANES - 1) // LANES) * LANES

    # Fold embedding gather + layer-0 input projection:  pre0 = one_hot @ (embedding @ Wih0) + b0
    emb_wih0 = (params["embedding"] @ params["w_ih0"]).astype(jnp.float32)       # (V, H)

    # Block-upper-triangular recurrence weight for the staggered 2-layer update.
    wblock = jnp.zeros((2 * H, 2 * H), jnp.float32)
    wblock = wblock.at[:H, :H].set(params["w_hh0"])
    wblock = wblock.at[:H, H:].set(params["w_ih1"])
    wblock = wblock.at[H:, H:].set(params["w_hh1"])

    # Output projection over the full 2H state: top half zero -> selects h2 implicitly. Lane-padded.
    wout2 = jnp.zeros((2 * H, Vp), jnp.float32).at[H:, :V].set(params["w_out"])  # (2H, Vp)
    bout_p = jnp.zeros((1, Vp), jnp.float32).at[:, :V].set(params["b_out"])      # (1, Vp)

    return {
        "emb_wih0": emb_wih0,
        "b0": params["b0"],
        "b1": params["b1"],
        "wblock": wblock.astype(jnp.bfloat16),   # bf16 MXU operands (accumulation stays f32)
        "wout2": wout2.astype(jnp.bfloat16),
        "b_out_p": bout_p,
        "vocab": V,
    }


def input_method_model_forward(x_ids, kparams):
    """x_ids: (B, T) int32 token ids. Returns logits (B, vocab) float32."""
    B, T = x_ids.shape
    Bp = ((B + SUBLANES - 1) // SUBLANES) * SUBLANES                     # pad batch to full sublanes
    V = kparams["vocab"]
    Vp = kparams["wout2"].shape[1]

    # Pad batch; flatten ids time-major and lane-dense so each wavefront is a sublane-aligned slice.
    x_pad = jnp.pad(x_ids.astype(jnp.int32), ((0, Bp - B), (0, 0)))      # (Bp, T)
    ids_row = x_pad.T.reshape(1, T * Bp)                                 # (1, T*Bp), col r = t*Bp + b

    vmem = pl.BlockSpec(memory_space=pltpu.MemorySpace.VMEM)
    out_p = pl.pallas_call(
        rnn_lm_kernel,
        out_shape=jax.ShapeDtypeStruct((Bp, Vp), jnp.float32),
        in_specs=[vmem] * 7,
        out_specs=vmem,
    )(ids_row,
      kparams["emb_wih0"], kparams["b0"], kparams["b1"],
      kparams["wblock"], kparams["wout2"], kparams["b_out_p"])
    return out_p[:B, :V]


def init_params(key, vocab_size, emb_dim, hidden):
    """Deterministic synthetic parameters (PyTorch-style U(-1/sqrt(H), 1/sqrt(H)) for RNN/Linear)."""
    ks = jax.random.split(key, 12)
    u = 1.0 / jnp.sqrt(hidden)

    def unif(k, shape, bound):
        return jax.random.uniform(k, shape, jnp.float32, minval=-bound, maxval=bound)

    # Weights stored transposed ((in, out)) relative to PyTorch so the math is x @ W.
    params = {
        "embedding": jax.random.normal(ks[0], (vocab_size, emb_dim), jnp.float32),
        "w_ih0": unif(ks[1], (emb_dim, hidden), u),
        "w_hh0": unif(ks[2], (hidden, hidden), u),
        # b_ih + b_hh combined into a single bias (mathematically identical)
        "b0": (unif(ks[3], (1, hidden), u) + unif(ks[4], (1, hidden), u)),
        "w_ih1": unif(ks[5], (hidden, hidden), u),
        "w_hh1": unif(ks[6], (hidden, hidden), u),
        "b1": (unif(ks[7], (1, hidden), u) + unif(ks[8], (1, hidden), u)),
        "w_out": unif(ks[9], (hidden, vocab_size), u),
        "b_out": unif(ks[10], (1, vocab_size), u),
    }
    return params


def reference_forward(x_ids, params):
    """Pure-JAX f32 reference matching the PyTorch forward (for a correctness self-check)."""
    emb = jnp.take(params["embedding"], x_ids, axis=0)       # (B, T, E)
    B, T, _ = emb.shape
    H = params["w_hh0"].shape[0]
    h1 = jnp.zeros((B, H), jnp.float32)
    h2 = jnp.zeros((B, H), jnp.float32)
    for t in range(T):
        x_t = emb[:, t, :]
        h1 = jnp.tanh(x_t @ params["w_ih0"] + h1 @ params["w_hh0"] + params["b0"])
        h2 = jnp.tanh(h1 @ params["w_ih1"] + h2 @ params["w_hh1"] + params["b1"])
    return h2 @ params["w_out"] + params["b_out"]


if __name__ == "__main__":
    key = jax.random.PRNGKey(0)
    k_param, k_ids = jax.random.split(key)

    params = init_params(k_param, VOCAB_SIZE, EMBEDDING_DIM, HIDDEN_SIZE)
    kparams = prepare_kernel_params(params)   # one-time layout prep (off the per-call path)
    x = jax.random.randint(k_ids, (BATCH, SEQ), 0, VOCAB_SIZE, dtype=jnp.int32)

    logits = input_method_model_forward(x, kparams)
    jax.block_until_ready(logits)

    assert logits.shape == (BATCH, VOCAB_SIZE), logits.shape
    assert logits.dtype == jnp.float32

    ref = reference_forward(x, params)
    # Tolerance is slightly looser than pure-f32 because the MXU operands are bf16
    # (tanh / adds / accumulation remain f32); errors stay well below this bound.
    np.testing.assert_allclose(np.asarray(logits), np.asarray(ref), rtol=3e-2, atol=3e-2)

    print("KERNEL_OK")
</pallas_src>

<mosaic_0001>
module attributes {stable_mosaic.version = 11 : i64} {
  func.func @rnn_lm_kernel(%arg0: memref<1x64xi32, #tpu.memory_space<vmem>>, %arg1: memref<64x32xf32, #tpu.memory_space<vmem>>, %arg2: memref<1x32xf32, #tpu.memory_space<vmem>>, %arg3: memref<1x32xf32, #tpu.memory_space<vmem>>, %arg4: memref<64x64xbf16, #tpu.memory_space<vmem>>, %arg5: memref<64x128xbf16, #tpu.memory_space<vmem>>, %arg6: memref<1x128xf32, #tpu.memory_space<vmem>>, %arg7: memref<8x128xf32, #tpu.memory_space<vmem>>) attributes {dimension_semantics = [], scalar_prefetch = 0 : i64, scratch_operands = 0 : i64, tpu.core_type = #tpu.core_type<tc>} {
    %c0 = arith.constant 0 : index
    %c0_0 = arith.constant 0 : index
    %0 = vector.load %arg0[%c0, %c0_0] : memref<1x64xi32, #tpu.memory_space<vmem>>, vector<1x64xi32>
    %1 = tpu.iota {dimensions = array<i32: 0>} : vector<64x64xi32>
    %2 = vector.broadcast %0 : vector<1x64xi32> to vector<64x64xi32>
    %3 = arith.cmpi eq, %1, %2 : vector<64x64xi32>
    %4 = arith.extui %3 : vector<64x64xi1> to vector<64x64xi32>
    %5 = arith.sitofp %4 : vector<64x64xi32> to vector<64x64xf32>
    %c0_1 = arith.constant 0 : index
    %c0_2 = arith.constant 0 : index
    %6 = vector.load %arg1[%c0_1, %c0_2] : memref<64x32xf32, #tpu.memory_space<vmem>>, vector<64x32xf32>
    %cst = arith.constant dense<0.000000e+00> : vector<64x32xf32>
    %7 = tpu.matmul %5, %6, %cst {dimension_numbers = #tpu.dot_dimension_numbers<[0], [0], [1], [1], [0, 1, 1, 1], [], []>} : vector<64x64xf32>, vector<64x32xf32>, vector<64x32xf32> -> vector<64x32xf32>
    %c0_3 = arith.constant 0 : index
    %c0_4 = arith.constant 0 : index
    %8 = vector.load %arg2[%c0_3, %c0_4] : memref<1x32xf32, #tpu.memory_space<vmem>>, vector<1x32xf32>
    %9 = vector.broadcast %8 : vector<1x32xf32> to vector<64x32xf32>
    %10 = arith.addf %7, %9 : vector<64x32xf32>
    %cst_5 = arith.constant 0.000000e+00 : f32
    %11 = vector.broadcast %cst_5 : f32 to vector<8x32xf32>
    %12 = tpu.concatenate %10, %11 in 0 : vector<64x32xf32>, vector<8x32xf32> -> vector<72x32xf32>
    %c0_6 = arith.constant 0 : index
    %c0_7 = arith.constant 0 : index
    %13 = vector.load %arg3[%c0_6, %c0_7] : memref<1x32xf32, #tpu.memory_space<vmem>>, vector<1x32xf32>
    %14 = vector.shape_cast %13 : vector<1x32xf32> to vector<1x32xf32>
    %15 = vector.broadcast %14 : vector<1x32xf32> to vector<64x32xf32>
    %16 = tpu.concatenate %11, %15 in 0 : vector<8x32xf32>, vector<64x32xf32> -> vector<72x32xf32>
    %17 = tpu.concatenate %12, %16 in 1 : vector<72x32xf32>, vector<72x32xf32> -> vector<72x64xf32>
    %c0_8 = arith.constant 0 : index
    %c0_9 = arith.constant 0 : index
    %18 = vector.load %arg4[%c0_8, %c0_9] : memref<64x64xbf16, #tpu.memory_space<vmem>>, vector<64x64xbf16>
    %19 = vector.extract_strided_slice %17 {offsets = [0, 0], sizes = [8, 64], strides = [1, 1]} : vector<72x64xf32> to vector<8x64xf32>
    %20 = math.tanh %19 : vector<8x64xf32>
    %21 = vector.extract_strided_slice %17 {offsets = [8, 0], sizes = [8, 64], strides = [1, 1]} : vector<72x64xf32> to vector<8x64xf32>
    %22 = arith.truncf %20 : vector<8x64xf32> to vector<8x64xbf16>
    %cst_10 = arith.constant dense<0.000000e+00> : vector<8x64xf32>
    %23 = tpu.matmul %22, %18, %cst_10 {dimension_numbers = #tpu.dot_dimension_numbers<[1], [0], [0], [1], [0, 0, 1, 1], [], []>} : vector<8x64xbf16>, vector<64x64xbf16>, vector<8x64xf32> -> vector<8x64xf32>
    %24 = arith.addf %21, %23 : vector<8x64xf32>
    %25 = math.tanh %24 : vector<8x64xf32>
    %26 = vector.extract_strided_slice %17 {offsets = [16, 0], sizes = [8, 64], strides = [1, 1]} : vector<72x64xf32> to vector<8x64xf32>
    %27 = arith.truncf %25 : vector<8x64xf32> to vector<8x64xbf16>
    %cst_11 = arith.constant dense<0.000000e+00> : vector<8x64xf32>
    %28 = tpu.matmul %27, %18, %cst_11 {dimension_numbers = #tpu.dot_dimension_numbers<[1], [0], [0], [1], [0, 0, 1, 1], [], []>} : vector<8x64xbf16>, vector<64x64xbf16>, vector<8x64xf32> -> vector<8x64xf32>
    %29 = arith.addf %26, %28 : vector<8x64xf32>
    %30 = math.tanh %29 : vector<8x64xf32>
    %31 = vector.extract_strided_slice %17 {offsets = [24, 0], sizes = [8, 64], strides = [1, 1]} : vector<72x64xf32> to vector<8x64xf32>
    %32 = arith.truncf %30 : vector<8x64xf32> to vector<8x64xbf16>
    %cst_12 = arith.constant dense<0.000000e+00> : vector<8x64xf32>
    %33 = tpu.matmul %32, %18, %cst_12 {dimension_numbers = #tpu.dot_dimension_numbers<[1], [0], [0], [1], [0, 0, 1, 1], [], []>} : vector<8x64xbf16>, vector<64x64xbf16>, vector<8x64xf32> -> vector<8x64xf32>
    %34 = arith.addf %31, %33 : vector<8x64xf32>
    %35 = math.tanh %34 : vector<8x64xf32>
    %36 = vector.extract_strided_slice %17 {offsets = [32, 0], sizes = [8, 64], strides = [1, 1]} : vector<72x64xf32> to vector<8x64xf32>
    %37 = arith.truncf %35 : vector<8x64xf32> to vector<8x64xbf16>
    %cst_13 = arith.constant dense<0.000000e+00> : vector<8x64xf32>
    %38 = tpu.matmul %37, %18, %cst_13 {dimension_numbers = #tpu.dot_dimension_numbers<[1], [0], [0], [1], [0, 0, 1, 1], [], []>} : vector<8x64xbf16>, vector<64x64xbf16>, vector<8x64xf32> -> vector<8x64xf32>
    %39 = arith.addf %36, %38 : vector<8x64xf32>
    %40 = math.tanh %39 : vector<8x64xf32>
    %41 = vector.extract_strided_slice %17 {offsets = [40, 0], sizes = [8, 64], strides = [1, 1]} : vector<72x64xf32> to vector<8x64xf32>
    %42 = arith.truncf %40 : vector<8x64xf32> to vector<8x64xbf16>
    %cst_14 = arith.constant dense<0.000000e+00> : vector<8x64xf32>
    %43 = tpu.matmul %42, %18, %cst_14 {dimension_numbers = #tpu.dot_dimension_numbers<[1], [0], [0], [1], [0, 0, 1, 1], [], []>} : vector<8x64xbf16>, vector<64x64xbf16>, vector<8x64xf32> -> vector<8x64xf32>
    %44 = arith.addf %41, %43 : vector<8x64xf32>
    %45 = math.tanh %44 : vector<8x64xf32>
    %46 = vector.extract_strided_slice %17 {offsets = [48, 0], sizes = [8, 64], strides = [1, 1]} : vector<72x64xf32> to vector<8x64xf32>
    %47 = arith.truncf %45 : vector<8x64xf32> to vector<8x64xbf16>
    %cst_15 = arith.constant dense<0.000000e+00> : vector<8x64xf32>
    %48 = tpu.matmul %47, %18, %cst_15 {dimension_numbers = #tpu.dot_dimension_numbers<[1], [0], [0], [1], [0, 0, 1, 1], [], []>} : vector<8x64xbf16>, vector<64x64xbf16>, vector<8x64xf32> -> vector<8x64xf32>
    %49 = arith.addf %46, %48 : vector<8x64xf32>
    %50 = math.tanh %49 : vector<8x64xf32>
    %51 = vector.extract_strided_slice %17 {offsets = [56, 0], sizes = [8, 64], strides = [1, 1]} : vector<72x64xf32> to vector<8x64xf32>
    %52 = arith.truncf %50 : vector<8x64xf32> to vector<8x64xbf16>
    %cst_16 = arith.constant dense<0.000000e+00> : vector<8x64xf32>
    %53 = tpu.matmul %52, %18, %cst_16 {dimension_numbers = #tpu.dot_dimension_numbers<[1], [0], [0], [1], [0, 0, 1, 1], [], []>} : vector<8x64xbf16>, vector<64x64xbf16>, vector<8x64xf32> -> vector<8x64xf32>
    %54 = arith.addf %51, %53 : vector<8x64xf32>
    %55 = math.tanh %54 : vector<8x64xf32>
    %56 = vector.extract_strided_slice %17 {offsets = [64, 0], sizes = [8, 64], strides = [1, 1]} : vector<72x64xf32> to vector<8x64xf32>
    %57 = arith.truncf %55 : vector<8x64xf32> to vector<8x64xbf16>
    %cst_17 = arith.constant dense<0.000000e+00> : vector<8x64xf32>
    %58 = tpu.matmul %57, %18, %cst_17 {dimension_numbers = #tpu.dot_dimension_numbers<[1], [0], [0], [1], [0, 0, 1, 1], [], []>} : vector<8x64xbf16>, vector<64x64xbf16>, vector<8x64xf32> -> vector<8x64xf32>
    %59 = arith.addf %56, %58 : vector<8x64xf32>
    %60 = math.tanh %59 : vector<8x64xf32>
    %61 = arith.truncf %60 : vector<8x64xf32> to vector<8x64xbf16>
    %c0_18 = arith.constant 0 : index
    %c0_19 = arith.constant 0 : index
    %62 = vector.load %arg5[%c0_18, %c0_19] : memref<64x128xbf16, #tpu.memory_space<vmem>>, vector<64x128xbf16>
    %cst_20 = arith.constant dense<0.000000e+00> : vector<8x128xf32>
    %63 = tpu.matmul %61, %62, %cst_20 {dimension_numbers = #tpu.dot_dimension_numbers<[1], [0], [0], [1], [0, 0, 1, 1], [], []>} : vector<8x64xbf16>, vector<64x128xbf16>, vector<8x128xf32> -> vector<8x128xf32>
    %c0_21 = arith.constant 0 : index
    %c0_22 = arith.constant 0 : index
    %64 = vector.load %arg6[%c0_21, %c0_22] : memref<1x128xf32, #tpu.memory_space<vmem>>, vector<1x128xf32>
    %65 = vector.broadcast %64 : vector<1x128xf32> to vector<8x128xf32>
    %66 = arith.addf %63, %65 : vector<8x128xf32>
    %c0_23 = arith.constant 0 : index
    %c0_24 = arith.constant 0 : index
    %67 = vector.load %arg7[%c0_23, %c0_24] : memref<8x128xf32, #tpu.memory_space<vmem>>, vector<8x128xf32>
    tpu.vector_store %arg7[%c0_23, %c0_24], %66 {strides = array<i32>} : memref<8x128xf32, #tpu.memory_space<vmem>>, vector<8x128xf32>,
    return
  }
}

</mosaic_0001>

<llo_original>
// kernel: tpu_custom_call.1
$region0: #{tpu_custom_call.1}
  #allocation0 [shape = 'u32[]', space=smem, size = 0x4, offset = 0x4, fixed_abs, tag = 'smem constant byte address 0x4 - core index']
  #allocation1 [shape = 'u32[144,128]{1,0:T(1,128)}', space=vmem, size = 0x12000, scoped, tag = 'internal scratch']
  %s0 = inlined_call_operand.vmem [shape: s32[1,64], index: 0, kind: input, shape index: {}]
  %s1 = inlined_call_operand.vmem [shape: f32[64,32], index: 1, kind: input, shape index: {}]
  %s2 = inlined_call_operand.vmem [shape: f32[1,32], index: 2, kind: input, shape index: {}]
  %s3 = inlined_call_operand.vmem [shape: f32[1,32], index: 3, kind: input, shape index: {}]
  %s4 = inlined_call_operand.vmem [shape: bf16[64,64], index: 4, kind: input, shape index: {}]
  %s5 = inlined_call_operand.vmem [shape: bf16[64,128], index: 5, kind: input, shape index: {}]
  %s6 = inlined_call_operand.vmem [shape: f32[1,128], index: 6, kind: input, shape index: {}]
  %s7 = inlined_call_operand.hbm [shape: f32[8,128], index: 7, kind: output, shape index: {}]
  %s8 = sld [smem:[#allocation0]]
  $region38: #{tpu_custom_call.1} parent=0
    _
  %s10 = ssub.s32 1, %s8
  %s11 = scalar_select 0, %s10, %s8
  $region1: #{tpu_custom_call.1} parent=0
    #allocation2 [shape = 'u8[4096]{0}', space=vmem, size = 0x1000, scoped, tag = 'output window, operand 0, single buffered']
    #allocation3 [shape = 's32[1]{0}', space=sflag, size = 0x4, scoped, tag = 'scoped memory for tpu_custom_call.1']
    %12 = vsyncpa [#allocation3], 0
    // Predicated region
    $region2: #{tpu_custom_call.1} parent=1 // pred_check
      _
    $region3: #{tpu_custom_call.1} parent=1 // pred_check_branch
      %14 = sbr.rel (0) target = $region5
    $region4: #{tpu_custom_call.1} parent=1 // pred_region
      _
    $region5: #{tpu_custom_call.1} parent=1 // pred_fallthru
      _
    // Predicated region
    $region6: #{tpu_custom_call.1} parent=1 // pred_check
      _
    $region7: #{tpu_custom_call.1} parent=1 // pred_check_branch
      %16 = sbr.rel (0) target = $region9
    $region8: #{tpu_custom_call.1} parent=1 // pred_region
      _
    $region9: #{tpu_custom_call.1} parent=1 // pred_fallthru
      _
    // Predicated region
    $region10: #{tpu_custom_call.1} parent=1 // pred_check
      _
    $region11: #{tpu_custom_call.1} parent=1 // pred_check_branch
      %18 = sbr.rel (0) target = $region13
    $region12: #{tpu_custom_call.1} parent=1 // pred_region
      _
    $region13: #{tpu_custom_call.1} parent=1 // pred_fallthru
      _
    // Predicated region
    $region14: #{tpu_custom_call.1} parent=1 // pred_check
      _
    $region15: #{tpu_custom_call.1} parent=1 // pred_check_branch
      %20 = sbr.rel (0) target = $region17
    $region16: #{tpu_custom_call.1} parent=1 // pred_region
      _
    $region17: #{tpu_custom_call.1} parent=1 // pred_fallthru
      _
    // Predicated region
    $region18: #{tpu_custom_call.1} parent=1 // pred_check
      _
    $region19: #{tpu_custom_call.1} parent=1 // pred_check_branch
      %22 = sbr.rel (0) target = $region21
    $region20: #{tpu_custom_call.1} parent=1 // pred_region
      _
    $region21: #{tpu_custom_call.1} parent=1 // pred_fallthru
      _
    // Predicated region
    $region22: #{tpu_custom_call.1} parent=1 // pred_check
      _
    $region23: #{tpu_custom_call.1} parent=1 // pred_check_branch
      %24 = sbr.rel (0) target = $region25
    $region24: #{tpu_custom_call.1} parent=1 // pred_region
      _
    $region25: #{tpu_custom_call.1} parent=1 // pred_fallthru
      _
    // Predicated region
    $region26: #{tpu_custom_call.1} parent=1 // pred_check
      _
    $region27: #{tpu_custom_call.1} parent=1 // pred_check_branch
      %26 = sbr.rel (0) target = $region29
    $region28: #{tpu_custom_call.1} parent=1 // pred_region
      _
    $region29: #{tpu_custom_call.1} parent=1 // pred_fallthru
      _
    %v28 = vld [vmem:[%s0] sm:$0x1]
    %v29 = vlaneseq
    %v30 = vshrl.u32 %v29, 7
    %v31 = vadd.s32 %v30, 8
    %v32 = vadd.s32 %v30, 16
    %v33 = vadd.s32 %v30, 24
    %v34 = vadd.s32 %v30, 32
    %v35 = vadd.s32 %v30, 40
    %v36 = vadd.s32 %v30, 48
    %v37 = vadd.s32 %v30, 56
    %v38 = vlaneseq
    %v39 = vshrl.u32 %v38, 7
    %v40 = vsub.s32 0, %v39
    %v41 = vrot.slane %v28, %v40
    %vm42 = vcmp.eq.s32.totalorder %v30, %v41
    %vm43 = vcmp.eq.s32.totalorder %v31, %v41
    %vm44 = vcmp.eq.s32.totalorder %v32, %v41
    %vm45 = vcmp.eq.s32.totalorder %v33, %v41
    %vm46 = vcmp.eq.s32.totalorder %v34, %v41
    %vm47 = vcmp.eq.s32.totalorder %v35, %v41
    %vm48 = vcmp.eq.s32.totalorder %v36, %v41
    %vm49 = vcmp.eq.s32.totalorder %v37, %v41
    %v50 = vsel %vm42, 1, 0
    %v51 = vsel %vm43, 1, 0
    %v52 = vsel %vm44, 1, 0
    %v53 = vsel %vm45, 1, 0
    %v54 = vsel %vm46, 1, 0
    %v55 = vsel %vm47, 1, 0
    %v56 = vsel %vm48, 1, 0
    %v57 = vsel %vm49, 1, 0
    %v58 = vcvt.s32.f32 %v50
    %v59 = vcvt.s32.f32 %v51
    %v60 = vcvt.s32.f32 %v52
    %v61 = vcvt.s32.f32 %v53
    %v62 = vcvt.s32.f32 %v54
    %v63 = vcvt.s32.f32 %v55
    %v64 = vcvt.s32.f32 %v56
    %v65 = vcvt.s32.f32 %v57
    %v66 = vld [vmem:[%s1] sm:$0xff]
    %v67 = vld [vmem:[%s1 + $0x8] sm:$0xff]
    %v68 = vld [vmem:[%s1 + $0x10] sm:$0xff]
    %v69 = vld [vmem:[%s1 + $0x18] sm:$0xff]
    %v70 = vld [vmem:[%s1 + $0x20] sm:$0xff]
    %v71 = vld [vmem:[%s1 + $0x28] sm:$0xff]
    %v72 = vld [vmem:[%s1 + $0x30] sm:$0xff]
    %v73 = vld [vmem:[%s1 + $0x38] sm:$0xff]
    %v74 = vld [vmem:[%s2] sm:$0x1]
    %v76 = vlaneseq
    %v77 = vshrl.u32 %v76, 7
    %v78 = vsub.s32 0, %v77
    %v79 = vrot.slane %v74, %v78
    %81 = vxpose.xlu0.b32.start [1/16] %v58, 128
    %82 = vxpose.xlu0.b32.cont [2/16] %v59, 128
    %83 = vxpose.xlu0.b32.cont [3/16] %v60, 128
    %84 = vxpose.xlu0.b32.cont [4/16] %v61, 128
    %85 = vxpose.xlu0.b32.cont [5/16] %v62, 128
    %86 = vxpose.xlu0.b32.cont [6/16] %v63, 128
    %87 = vxpose.xlu0.b32.cont [7/16] %v64, 128
    %88 = vxpose.xlu0.b32.cont [8/16] %v65, 128
    %89 = vxpose.xlu0.b32.cont [9/16] 0.0, 128
    %90 = vxpose.xlu0.b32.cont [10/16] 0.0, 128
    %91 = vxpose.xlu0.b32.cont [11/16] 0.0, 128
    %92 = vxpose.xlu0.b32.cont [12/16] 0.0, 128
    %93 = vxpose.xlu0.b32.cont [13/16] 0.0, 128
    %94 = vxpose.xlu0.b32.cont [14/16] 0.0, 128
    %95 = vxpose.xlu0.b32.cont [15/16] 0.0, 128
    %96 = vxpose.xlu0.b32.end [16/16] 0.0, 128
    %v97 = vpop.trf.xlu0
    %v98 = vpop.trf.xlu0
    %v99 = vpop.trf.xlu0
    %v100 = vpop.trf.xlu0
    %v101 = vpop.trf.xlu0
    %v102 = vpop.trf.xlu0
    %v103 = vpop.trf.xlu0
    %v104 = vpop.trf.xlu0
    %v105 = vpop.trf.xlu0
    %v106 = vpop.trf.xlu0
    %v107 = vpop.trf.xlu0
    %v108 = vpop.trf.xlu0
    %v109 = vpop.trf.xlu0
    %v110 = vpop.trf.xlu0
    %v111 = vpop.trf.xlu0
    %v112 = vpop.trf.xlu0
    %vm113 = vcmask 523264
    %v115 = vsel %vm113, %v97, 0
    %v118 = vsel %vm113, %v98, 0
    %v121 = vsel %vm113, %v99, 0
    %v124 = vsel %vm113, %v100, 0
    %v127 = vsel %vm113, %v101, 0
    %v130 = vsel %vm113, %v102, 0
    %v133 = vsel %vm113, %v103, 0
    %v136 = vsel %vm113, %v104, 0
    %138 = vmatprep.subr.mxu0 0.0
    %139 = vmatpush1.msra.mxu0 %v66
    %140 = vmatprep.subr.mxu0 0.0
    %141 = vmatpush1.msra.mxu0 %v67
    %142 = vmatprep.subr.mxu0 0.0
    %143 = vmatpush1.msra.mxu0 %v68
    %144 = vmatprep.subr.mxu0 0.0
    %145 = vmatpush1.msra.mxu0 %v69
    %146 = vmatprep.subr.mxu0 0.0
    %147 = vmatpush1.msra.mxu0 %v70
    %148 = vmatprep.subr.mxu0 0.0
    %149 = vmatpush1.msra.mxu0 %v71
    %150 = vmatprep.subr.mxu0 0.0
    %151 = vmatpush1.msra.mxu0 %v72
    %152 = vmatprep.subr.mxu0 0.0
    %153 = vmatpush1.msra.mxu0 %v73
    %154 = vmatprep.subr.mxu0 0.0
    %155 = vmatpush1.msra.mxu0 0.0
    %156 = vmatprep.subr.mxu0 0.0
    %157 = vmatpush1.msra.mxu0 0.0
    %158 = vmatprep.subr.mxu0 0.0
    %159 = vmatpush1.msra.mxu0 0.0
    %160 = vmatprep.subr.mxu0 0.0
    %161 = vmatpush1.msra.mxu0 0.0
    %162 = vmatprep.subr.mxu0 0.0
    %163 = vmatpush1.msra.mxu0 0.0
    %164 = vmatprep.subr.mxu0 0.0
    %165 = vmatpush1.msra.mxu0 0.0
    %166 = vmatprep.subr.mxu0 0.0
    %167 = vmatpush1.msra.mxu0 0.0
    %168 = vmatprep.subr.mxu0 0.0
    %169 = vmatpush1.msra.mxu0 0.0
    %170 = vmatprep.subr.mxu0 0.0
    %171 = vmatpush1.msra.mxu0 0.0
    %172 = vmatprep.subr.mxu0 0.0
    %173 = vmatpush1.msra.mxu0 0.0
    %174 = vmatprep.subr.mxu0 0.0
    %175 = vmatpush1.msra.mxu0 0.0
    %176 = vmatprep.subr.mxu0 0.0
    %177 = vmatpush1.msra.mxu0 0.0
    %178 = vmatprep.subr.mxu0 0.0
    %179 = vmatpush1.msra.mxu0 0.0
    %180 = vmatprep.subr.mxu0 0.0
    %181 = vmatpush1.msra.mxu0 0.0
    %182 = vmatprep.subr.mxu0 0.0
    %183 = vmatpush1.msra.mxu0 0.0
    %184 = vmatprep.subr.mxu0 0.0
    %185 = vmatpush1.msra.mxu0 0.0
    %186 = vmatprep.subr.mxu0 0.0
    %187 = vmatpush1.msra.mxu0 0.0
    %188 = vmatprep.subr.mxu0 0.0
    %189 = vmatpush1.msra.mxu0 0.0
    %190 = vmatprep.subr.mxu0 0.0
    %191 = vmatpush1.msra.mxu0 0.0
    %192 = vmatprep.subr.mxu0 0.0
    %193 = vmatpush1.msra.mxu0 0.0
    %194 = vmatprep.subr.mxu0 0.0
    %195 = vmatpush1.msra.mxu0 0.0
    %196 = vmatprep.subr.mxu0 0.0
    %197 = vmatpush1.msra.mxu0 0.0
    %198 = vmatprep.subr.mxu0 0.0
    %199 = vmatpush1.msra.mxu0 0.0
    %200 = vmatprep.subr.mxu0 0.0
    %201 = vmatpush1.msra.mxu0 0.0
    %202 = vmatprep.mubr.f32.mxu0 0.0
    %203 = vmatmul.mubr.f32.gmra.mrb[0].mxu0 %v115
    %v204 = vpop.f32.mrb[0].mxu0
    %v205 = vadd.f32 %v79, %v204
    %v206 = vpop.f32.mrb[0].mxu0
    %207 = vmatprep.mubr.f32.mxu0 0.0
    %208 = vmatmul.mubr.f32.gmra.mrb[0].mxu0 %v118
    %v209 = vpop.f32.mrb[0].mxu0
    %v210 = vadd.f32 %v79, %v209
    %v211 = vpop.f32.mrb[0].mxu0
    %212 = vmatprep.mubr.f32.mxu0 0.0
    %213 = vmatmul.mubr.f32.gmra.mrb[0].mxu0 %v121
    %v214 = vpop.f32.mrb[0].mxu0
    %v215 = vadd.f32 %v79, %v214
    %v216 = vpop.f32.mrb[0].mxu0
    %217 = vmatprep.mubr.f32.mxu0 0.0
    %218 = vmatmul.mubr.f32.gmra.mrb[0].mxu0 %v124
    %v219 = vpop.f32.mrb[0].mxu0
    %v220 = vadd.f32 %v79, %v219
    %v221 = vpop.f32.mrb[0].mxu0
    %222 = vmatprep.mubr.f32.mxu0 0.0
    %223 = vmatmul.mubr.f32.gmra.mrb[0].mxu0 %v127
    %v224 = vpop.f32.mrb[0].mxu0
    %v225 = vadd.f32 %v79, %v224
    %v226 = vpop.f32.mrb[0].mxu0
    %227 = vmatprep.mubr.f32.mxu0 0.0
    %228 = vmatmul.mubr.f32.gmra.mrb[0].mxu0 %v130
    %v229 = vpop.f32.mrb[0].mxu0
    %v230 = vadd.f32 %v79, %v229
    %v231 = vpop.f32.mrb[0].mxu0
    %232 = vmatprep.mubr.f32.mxu0 0.0
    %233 = vmatmul.mubr.f32.gmra.mrb[0].mxu0 %v133
    %v234 = vpop.f32.mrb[0].mxu0
    %v235 = vadd.f32 %v79, %v234
    %v236 = vpop.f32.mrb[0].mxu0
    %237 = vmatprep.mubr.f32.mxu0 0.0
    %238 = vmatmul.mubr.f32.gmra.mrb[0].mxu0 %v136
    %v239 = vpop.f32.mrb[0].mxu0
    %v240 = vadd.f32 %v79, %v239
    %v241 = vpop.f32.mrb[0].mxu0
    %242 = vdwg.mxu0
    %v243 = vld [vmem:[%s3] sm:$0x1]
    %v245 = vlaneseq
    %v246 = vshrl.u32 %v245, 7
    %v247 = vsub.s32 0, %v246
    %v248 = vrot.slane %v243, %v247
    %250 = vrot.lane.b32.xlu0 0.0, 32
    %v251 = vpop.permute.xlu0 %250
    %252 = vrot.lane.b32.xlu0 %v248, 32
    %v253 = vpop.permute.xlu0 %252
    %vm256 = vcmask 261120
    %v257 = vsel %vm256, %v205, %v251
    %v258 = vsel %vm256, %v210, %v253
    %v259 = vsel %vm256, %v215, %v253
    %v260 = vsel %vm256, %v220, %v253
    %v261 = vsel %vm256, %v225, %v253
    %v262 = vsel %vm256, %v230, %v253
    %v263 = vsel %vm256, %v235, %v253
    %v264 = vsel %vm256, %v240, %v253
    %v265 = vsel %vm256, 0.0, %v253
    %v266 = vld [vmem:[%s4] sm:$0xf]
    %v267 = vld [vmem:[%s4 + $0x4] sm:$0xf]
    %v268 = vld [vmem:[%s4 + $0x8] sm:$0xf]
    %v269 = vld [vmem:[%s4 + $0xc] sm:$0xf]
    %v270 = vld [vmem:[%s4 + $0x10] sm:$0xf]
    %v271 = vld [vmem:[%s4 + $0x14] sm:$0xf]
    %v272 = vld [vmem:[%s4 + $0x18] sm:$0xf]
    %v273 = vld [vmem:[%s4 + $0x1c] sm:$0xf]
    %v274 = vtanh.pop %v257
    %v275 = vpack.c.bf16 %v274, %v274
    %v284 = vunpack.c.l.b16 %v266
    %v285 = vunpack.c.l.b16 %v267
    %v286 = vunpack.c.l.b16 %v268
    %v287 = vunpack.c.l.b16 %v269
    %v288 = vunpack.c.l.b16 %v270
    %v289 = vunpack.c.l.b16 %v271
    %v290 = vunpack.c.l.b16 %v272
    %v291 = vunpack.c.l.b16 %v273
    %v292 = vpack.c.b16 %v285, %v284
    %v293 = vpack.c.b16 %v287, %v286
    %v294 = vpack.c.b16 %v289, %v288
    %v295 = vpack.c.b16 %v291, %v290
    %v301 = vsel %vm113, %v275, 0
    %303 = vmatprep.subr.bf16.mxu0 0
    %304 = vmatpush1.bf16.msra.mxu0 %v292
    %305 = vmatprep.subr.bf16.mxu0 0
    %306 = vmatpush1.bf16.msra.mxu0 %v293
    %307 = vmatprep.subr.bf16.mxu0 0
    %308 = vmatpush1.bf16.msra.mxu0 %v294
    %309 = vmatprep.subr.bf16.mxu0 0
    %310 = vmatpush1.bf16.msra.mxu0 %v295
    %311 = vmatprep.subr.bf16.mxu0 0
    %312 = vmatpush1.bf16.msra.mxu0 0
    %313 = vmatprep.subr.bf16.mxu0 0
    %314 = vmatpush1.bf16.msra.mxu0 0
    %315 = vmatprep.subr.bf16.mxu0 0
    %316 = vmatpush1.bf16.msra.mxu0 0
    %317 = vmatprep.subr.bf16.mxu0 0
    %318 = vmatpush1.bf16.msra.mxu0 0
    %319 = vmatprep.subr.bf16.mxu0 0
    %320 = vmatpush1.bf16.msra.mxu0 0
    %321 = vmatprep.subr.bf16.mxu0 0
    %322 = vmatpush1.bf16.msra.mxu0 0
    %323 = vmatprep.subr.bf16.mxu0 0
    %324 = vmatpush1.bf16.msra.mxu0 0
    %325 = vmatprep.subr.bf16.mxu0 0
    %326 = vmatpush1.bf16.msra.mxu0 0
    %327 = vmatprep.subr.bf16.mxu0 0
    %328 = vmatpush1.bf16.msra.mxu0 0
    %329 = vmatprep.subr.bf16.mxu0 0
    %330 = vmatpush1.bf16.msra.mxu0 0
    %331 = vmatprep.subr.bf16.mxu0 0
    %332 = vmatpush1.bf16.msra.mxu0 0
    %333 = vmatprep.subr.bf16.mxu0 0
    %334 = vmatpush1.bf16.msra.mxu0 0
    %335 = vmatprep.mubr.bf16.mxu0 0
    %336 = vmatmul.mubr.bf16.gmra.mrb[0].mxu0 %v301
    %v337 = vpop.f32.mrb[0].mxu0
    %v338 = vadd.f32 0.0, %v337
    %v339 = vpop.f32.mrb[0].mxu0
    %v340 = vpop.f32.mrb[0].mxu0
    %v341 = vpop.f32.mrb[0].mxu0
    %342 = vdwg.mxu0
    %v343 = vadd.f32 %v258, %v338
    %v344 = vtanh.pop %v343
    %v345 = vpack.c.bf16 %v344, %v344
    %v347 = vsel %vm113, %v345, 0
    %349 = vmatprep.subr.bf16.mxu0 0
    %350 = vmatpush1.bf16.msra.mxu0 %v292
    %351 = vmatprep.subr.bf16.mxu0 0
    %352 = vmatpush1.bf16.msra.mxu0 %v293
    %353 = vmatprep.subr.bf16.mxu0 0
    %354 = vmatpush1.bf16.msra.mxu0 %v294
    %355 = vmatprep.subr.bf16.mxu0 0
    %356 = vmatpush1.bf16.msra.mxu0 %v295
    %357 = vmatprep.subr.bf16.mxu0 0
    %358 = vmatpush1.bf16.msra.mxu0 0
    %359 = vmatprep.subr.bf16.mxu0 0
    %360 = vmatpush1.bf16.msra.mxu0 0
    %361 = vmatprep.subr.bf16.mxu0 0
    %362 = vmatpush1.bf16.msra.mxu0 0
    %363 = vmatprep.subr.bf16.mxu0 0
    %364 = vmatpush1.bf16.msra.mxu0 0
    %365 = vmatprep.subr.bf16.mxu0 0
    %366 = vmatpush1.bf16.msra.mxu0 0
    %367 = vmatprep.subr.bf16.mxu0 0
    %368 = vmatpush1.bf16.msra.mxu0 0
    %369 = vmatprep.subr.bf16.mxu0 0
    %370 = vmatpush1.bf16.msra.mxu0 0
    %371 = vmatprep.subr.bf16.mxu0 0
    %372 = vmatpush1.bf16.msra.mxu0 0
    %373 = vmatprep.subr.bf16.mxu0 0
    %374 = vmatpush1.bf16.msra.mxu0 0
    %375 = vmatprep.subr.bf16.mxu0 0
    %376 = vmatpush1.bf16.msra.mxu0 0
    %377 = vmatprep.subr.bf16.mxu0 0
    %378 = vmatpush1.bf16.msra.mxu0 0
    %379 = vmatprep.subr.bf16.mxu0 0
    %380 = vmatpush1.bf16.msra.mxu0 0
    %381 = vmatprep.mubr.bf16.mxu0 0
    %382 = vmatmul.mubr.bf16.gmra.mrb[0].mxu0 %v347
    %v383 = vpop.f32.mrb[0].mxu0
    %v384 = vadd.f32 0.0, %v383
    %v385 = vpop.f32.mrb[0].mxu0
    %v386 = vpop.f32.mrb[0].mxu0
    %v387 = vpop.f32.mrb[0].mxu0
    %388 = vdwg.mxu0
    %v389 = vadd.f32 %v259, %v384
    %v390 = vtanh.pop %v389
    %v391 = vpack.c.bf16 %v390, %v390
    %v393 = vsel %vm113, %v391, 0
    %395 = vmatprep.subr.bf16.mxu0 0
    %396 = vmatpush1.bf16.msra.mxu0 %v292
    %397 = vmatprep.subr.bf16.mxu0 0
    %398 = vmatpush1.bf16.msra.mxu0 %v293
    %399 = vmatprep.subr.bf16.mxu0 0
    %400 = vmatpush1.bf16.msra.mxu0 %v294
    %401 = vmatprep.subr.bf16.mxu0 0
    %402 = vmatpush1.bf16.msra.mxu0 %v295
    %403 = vmatprep.subr.bf16.mxu0 0
    %404 = vmatpush1.bf16.msra.mxu0 0
    %405 = vmatprep.subr.bf16.mxu0 0
    %406 = vmatpush1.bf16.msra.mxu0 0
    %407 = vmatprep.subr.bf16.mxu0 0
    %408 = vmatpush1.bf16.msra.mxu0 0
    %409 = vmatprep.subr.bf16.mxu0 0
    %410 = vmatpush1.bf16.msra.mxu0 0
    %411 = vmatprep.subr.bf16.mxu0 0
    %412 = vmatpush1.bf16.msra.mxu0 0
    %413 = vmatprep.subr.bf16.mxu0 0
    %414 = vmatpush1.bf16.msra.mxu0 0
    %415 = vmatprep.subr.bf16.mxu0 0
    %416 = vmatpush1.bf16.msra.mxu0 0
    %417 = vmatprep.subr.bf16.mxu0 0
    %418 = vmatpush1.bf16.msra.mxu0 0
    %419 = vmatprep.subr.bf16.mxu0 0
    %420 = vmatpush1.bf16.msra.mxu0 0
    %421 = vmatprep.subr.bf16.mxu0 0
    %422 = vmatpush1.bf16.msra.mxu0 0
    %423 = vmatprep.subr.bf16.mxu0 0
    %424 = vmatpush1.bf16.msra.mxu0 0
    %425 = vmatprep.subr.bf16.mxu0 0
    %426 = vmatpush1.bf16.msra.mxu0 0
    %427 = vmatprep.mubr.bf16.mxu0 0
    %428 = vmatmul.mubr.bf16.gmra.mrb[0].mxu0 %v393
    %v429 = vpop.f32.mrb[0].mxu0
    %v430 = vadd.f32 0.0, %v429
    %v431 = vpop.f32.mrb[0].mxu0
    %v432 = vpop.f32.mrb[0].mxu0
    %v433 = vpop.f32.mrb[0].mxu0
    %434 = vdwg.mxu0
    %v435 = vadd.f32 %v260, %v430
    %v436 = vtanh.pop %v435
    %v437 = vpack.c.bf16 %v436, %v436
    %v439 = vsel %vm113, %v437, 0
    %441 = vmatprep.subr.bf16.mxu0 0
    %442 = vmatpush1.bf16.msra.mxu0 %v292
    %443 = vmatprep.subr.bf16.mxu0 0
    %444 = vmatpush1.bf16.msra.mxu0 %v293
    %445 = vmatprep.subr.bf16.mxu0 0
    %446 = vmatpush1.bf16.msra.mxu0 %v294
    %447 = vmatprep.subr.bf16.mxu0 0
    %448 = vmatpush1.bf16.msra.mxu0 %v295
    %449 = vmatprep.subr.bf16.mxu0 0
    %450 = vmatpush1.bf16.msra.mxu0 0
    %451 = vmatprep.subr.bf16.mxu0 0
    %452 = vmatpush1.bf16.msra.mxu0 0
    %453 = vmatprep.subr.bf16.mxu0 0
    %454 = vmatpush1.bf16.msra.mxu0 0
    %455 = vmatprep.subr.bf16.mxu0 0
    %456 = vmatpush1.bf16.msra.mxu0 0
    %457 = vmatprep.subr.bf16.mxu0 0
    %458 = vmatpush1.bf16.msra.mxu0 0
    %459 = vmatprep.subr.bf16.mxu0 0
    %460 = vmatpush1.bf16.msra.mxu0 0
    %461 = vmatprep.subr.bf16.mxu0 0
    %462 = vmatpush1.bf16.msra.mxu0 0
    %463 = vmatprep.subr.bf16.mxu0 0
    %464 = vmatpush1.bf16.msra.mxu0 0
    %465 = vmatprep.subr.bf16.mxu0 0
    %466 = vmatpush1.bf16.msra.mxu0 0
    %467 = vmatprep.subr.bf16.mxu0 0
    %468 = vmatpush1.bf16.msra.mxu0 0
    %469 = vmatprep.subr.bf16.mxu0 0
    %470 = vmatpush1.bf16.msra.mxu0 0
    %471 = vmatprep.subr.bf16.mxu0 0
    %472 = vmatpush1.bf16.msra.mxu0 0
    %473 = vmatprep.mubr.bf16.mxu0 0
    %474 = vmatmul.mubr.bf16.gmra.mrb[0].mxu0 %v439
    %v475 = vpop.f32.mrb[0].mxu0
    %v476 = vadd.f32 0.0, %v475
    %v477 = vpop.f32.mrb[0].mxu0
    %v478 = vpop.f32.mrb[0].mxu0
    %v479 = vpop.f32.mrb[0].mxu0
    %480 = vdwg.mxu0
    %v481 = vadd.f32 %v261, %v476
    %v482 = vtanh.pop %v481
    %v483 = vpack.c.bf16 %v482, %v482
    %v485 = vsel %vm113, %v483, 0
    %487 = vmatprep.subr.bf16.mxu0 0
    %488 = vmatpush1.bf16.msra.mxu0 %v292
    %489 = vmatprep.subr.bf16.mxu0 0
    %490 = vmatpush1.bf16.msra.mxu0 %v293
    %491 = vmatprep.subr.bf16.mxu0 0
    %492 = vmatpush1.bf16.msra.mxu0 %v294
    %493 = vmatprep.subr.bf16.mxu0 0
    %494 = vmatpush1.bf16.msra.mxu0 %v295
    %495 = vmatprep.subr.bf16.mxu0 0
    %496 = vmatpush1.bf16.msra.mxu0 0
    %497 = vmatprep.subr.bf16.mxu0 0
    %498 = vmatpush1.bf16.msra.mxu0 0
    %499 = vmatprep.subr.bf16.mxu0 0
    %500 = vmatpush1.bf16.msra.mxu0 0
    %501 = vmatprep.subr.bf16.mxu0 0
    %502 = vmatpush1.bf16.msra.mxu0 0
    %503 = vmatprep.subr.bf16.mxu0 0
    %504 = vmatpush1.bf16.msra.mxu0 0
    %505 = vmatprep.subr.bf16.mxu0 0
    %506 = vmatpush1.bf16.msra.mxu0 0
    %507 = vmatprep.subr.bf16.mxu0 0
    %508 = vmatpush1.bf16.msra.mxu0 0
    %509 = vmatprep.subr.bf16.mxu0 0
    %510 = vmatpush1.bf16.msra.mxu0 0
    %511 = vmatprep.subr.bf16.mxu0 0
    %512 = vmatpush1.bf16.msra.mxu0 0
    %513 = vmatprep.subr.bf16.mxu0 0
    %514 = vmatpush1.bf16.msra.mxu0 0
    %515 = vmatprep.subr.bf16.mxu0 0
    %516 = vmatpush1.bf16.msra.mxu0 0
    %517 = vmatprep.subr.bf16.mxu0 0
    %518 = vmatpush1.bf16.msra.mxu0 0
    %519 = vmatprep.mubr.bf16.mxu0 0
    %520 = vmatmul.mubr.bf16.gmra.mrb[0].mxu0 %v485
    %v521 = vpop.f32.mrb[0].mxu0
    %v522 = vadd.f32 0.0, %v521
    %v523 = vpop.f32.mrb[0].mxu0
    %v524 = vpop.f32.mrb[0].mxu0
    %v525 = vpop.f32.mrb[0].mxu0
    %526 = vdwg.mxu0
    %v527 = vadd.f32 %v262, %v522
    %v528 = vtanh.pop %v527
    %v529 = vpack.c.bf16 %v528, %v528
    %v531 = vsel %vm113, %v529, 0
    %533 = vmatprep.subr.bf16.mxu0 0
    %534 = vmatpush1.bf16.msra.mxu0 %v292
    %535 = vmatprep.subr.bf16.mxu0 0
    %536 = vmatpush1.bf16.msra.mxu0 %v293
    %537 = vmatprep.subr.bf16.mxu0 0
    %538 = vmatpush1.bf16.msra.mxu0 %v294
    %539 = vmatprep.subr.bf16.mxu0 0
    %540 = vmatpush1.bf16.msra.mxu0 %v295
    %541 = vmatprep.subr.bf16.mxu0 0
    %542 = vmatpush1.bf16.msra.mxu0 0
    %543 = vmatprep.subr.bf16.mxu0 0
    %544 = vmatpush1.bf16.msra.mxu0 0
    %545 = vmatprep.subr.bf16.mxu0 0
    %546 = vmatpush1.bf16.msra.mxu0 0
    %547 = vmatprep.subr.bf16.mxu0 0
    %548 = vmatpush1.bf16.msra.mxu0 0
    %549 = vmatprep.subr.bf16.mxu0 0
    %550 = vmatpush1.bf16.msra.mxu0 0
    %551 = vmatprep.subr.bf16.mxu0 0
    %552 = vmatpush1.bf16.msra.mxu0 0
    %553 = vmatprep.subr.bf16.mxu0 0
    %554 = vmatpush1.bf16.msra.mxu0 0
    %555 = vmatprep.subr.bf16.mxu0 0
    %556 = vmatpush1.bf16.msra.mxu0 0
    %557 = vmatprep.subr.bf16.mxu0 0
    %558 = vmatpush1.bf16.msra.mxu0 0
    %559 = vmatprep.subr.bf16.mxu0 0
    %560 = vmatpush1.bf16.msra.mxu0 0
    %561 = vmatprep.subr.bf16.mxu0 0
    %562 = vmatpush1.bf16.msra.mxu0 0
    %563 = vmatprep.subr.bf16.mxu0 0
    %564 = vmatpush1.bf16.msra.mxu0 0
    %565 = vmatprep.mubr.bf16.mxu0 0
    %566 = vmatmul.mubr.bf16.gmra.mrb[0].mxu0 %v531
    %v567 = vpop.f32.mrb[0].mxu0
    %v568 = vadd.f32 0.0, %v567
    %v569 = vpop.f32.mrb[0].mxu0
    %v570 = vpop.f32.mrb[0].mxu0
    %v571 = vpop.f32.mrb[0].mxu0
    %572 = vdwg.mxu0
    %v573 = vadd.f32 %v263, %v568
    %v574 = vtanh.pop %v573
    %v575 = vpack.c.bf16 %v574, %v574
    %v577 = vsel %vm113, %v575, 0
    %579 = vmatprep.subr.bf16.mxu0 0
    %580 = vmatpush1.bf16.msra.mxu0 %v292
    %581 = vmatprep.subr.bf16.mxu0 0
    %582 = vmatpush1.bf16.msra.mxu0 %v293
    %583 = vmatprep.subr.bf16.mxu0 0
    %584 = vmatpush1.bf16.msra.mxu0 %v294
    %585 = vmatprep.subr.bf16.mxu0 0
    %586 = vmatpush1.bf16.msra.mxu0 %v295
    %587 = vmatprep.subr.bf16.mxu0 0
    %588 = vmatpush1.bf16.msra.mxu0 0
    %589 = vmatprep.subr.bf16.mxu0 0
    %590 = vmatpush1.bf16.msra.mxu0 0
    %591 = vmatprep.subr.bf16.mxu0 0
    %592 = vmatpush1.bf16.msra.mxu0 0
    %593 = vmatprep.subr.bf16.mxu0 0
    %594 = vmatpush1.bf16.msra.mxu0 0
    %595 = vmatprep.subr.bf16.mxu0 0
    %596 = vmatpush1.bf16.msra.mxu0 0
    %597 = vmatprep.subr.bf16.mxu0 0
    %598 = vmatpush1.bf16.msra.mxu0 0
    %599 = vmatprep.subr.bf16.mxu0 0
    %600 = vmatpush1.bf16.msra.mxu0 0
    %601 = vmatprep.subr.bf16.mxu0 0
    %602 = vmatpush1.bf16.msra.mxu0 0
    %603 = vmatprep.subr.bf16.mxu0 0
    %604 = vmatpush1.bf16.msra.mxu0 0
    %605 = vmatprep.subr.bf16.mxu0 0
    %606 = vmatpush1.bf16.msra.mxu0 0
    %607 = vmatprep.subr.bf16.mxu0 0
    %608 = vmatpush1.bf16.msra.mxu0 0
    %609 = vmatprep.subr.bf16.mxu0 0
    %610 = vmatpush1.bf16.msra.mxu0 0
    %611 = vmatprep.mubr.bf16.mxu0 0
    %612 = vmatmul.mubr.bf16.gmra.mrb[0].mxu0 %v577
    %v613 = vpop.f32.mrb[0].mxu0
    %v614 = vadd.f32 0.0, %v613
    %v615 = vpop.f32.mrb[0].mxu0
    %v616 = vpop.f32.mrb[0].mxu0
    %v617 = vpop.f32.mrb[0].mxu0
    %618 = vdwg.mxu0
    %v619 = vadd.f32 %v264, %v614
    %v620 = vtanh.pop %v619
    %v621 = vpack.c.bf16 %v620, %v620
    %v623 = vsel %vm113, %v621, 0
    %625 = vmatprep.subr.bf16.mxu0 0
    %626 = vmatpush1.bf16.msra.mxu0 %v292
    %627 = vmatprep.subr.bf16.mxu0 0
    %628 = vmatpush1.bf16.msra.mxu0 %v293
    %629 = vmatprep.subr.bf16.mxu0 0
    %630 = vmatpush1.bf16.msra.mxu0 %v294
    %631 = vmatprep.subr.bf16.mxu0 0
    %632 = vmatpush1.bf16.msra.mxu0 %v295
    %633 = vmatprep.subr.bf16.mxu0 0
    %634 = vmatpush1.bf16.msra.mxu0 0
    %635 = vmatprep.subr.bf16.mxu0 0
    %636 = vmatpush1.bf16.msra.mxu0 0
    %637 = vmatprep.subr.bf16.mxu0 0
    %638 = vmatpush1.bf16.msra.mxu0 0
    %639 = vmatprep.subr.bf16.mxu0 0
    %640 = vmatpush1.bf16.msra.mxu0 0
    %641 = vmatprep.subr.bf16.mxu0 0
    %642 = vmatpush1.bf16.msra.mxu0 0
    %643 = vmatprep.subr.bf16.mxu0 0
    %644 = vmatpush1.bf16.msra.mxu0 0
    %645 = vmatprep.subr.bf16.mxu0 0
    %646 = vmatpush1.bf16.msra.mxu0 0
    %647 = vmatprep.subr.bf16.mxu0 0
    %648 = vmatpush1.bf16.msra.mxu0 0
    %649 = vmatprep.subr.bf16.mxu0 0
    %650 = vmatpush1.bf16.msra.mxu0 0
    %651 = vmatprep.subr.bf16.mxu0 0
    %652 = vmatpush1.bf16.msra.mxu0 0
    %653 = vmatprep.subr.bf16.mxu0 0
    %654 = vmatpush1.bf16.msra.mxu0 0
    %655 = vmatprep.subr.bf16.mxu0 0
    %656 = vmatpush1.bf16.msra.mxu0 0
    %657 = vmatprep.mubr.bf16.mxu0 0
    %658 = vmatmul.mubr.bf16.gmra.mrb[0].mxu0 %v623
    %v659 = vpop.f32.mrb[0].mxu0
    %v660 = vadd.f32 0.0, %v659
    %v661 = vpop.f32.mrb[0].mxu0
    %v662 = vpop.f32.mrb[0].mxu0
    %v663 = vpop.f32.mrb[0].mxu0
    %664 = vdwg.mxu0
    %v665 = vadd.f32 %v265, %v660
    %v666 = vtanh.pop %v665
    %v667 = vpack.c.bf16 %v666, %v666
    %v668 = vld [vmem:[%s5] sm:$0xf]
    %v669 = vld [vmem:[%s5 + $0x4] sm:$0xf]
    %v670 = vld [vmem:[%s5 + $0x8] sm:$0xf]
    %v671 = vld [vmem:[%s5 + $0xc] sm:$0xf]
    %v672 = vld [vmem:[%s5 + $0x10] sm:$0xf]
    %v673 = vld [vmem:[%s5 + $0x14] sm:$0xf]
    %v674 = vld [vmem:[%s5 + $0x18] sm:$0xf]
    %v675 = vld [vmem:[%s5 + $0x1c] sm:$0xf]
    %v676 = vld [vmem:[%s6] sm:$0x1]
    %v678 = vlaneseq
    %v679 = vshrl.u32 %v678, 7
    %v680 = vsub.s32 0, %v679
    %v681 = vrot.slane %v676, %v680
    %v691 = vunpack.c.l.b16 %v668
    %v692 = vunpack.c.l.b16 %v669
    %v693 = vunpack.c.l.b16 %v670
    %v694 = vunpack.c.l.b16 %v671
    %v695 = vunpack.c.l.b16 %v672
    %v696 = vunpack.c.l.b16 %v673
    %v697 = vunpack.c.l.b16 %v674
    %v698 = vunpack.c.l.b16 %v675
    %v699 = vpack.c.b16 %v692, %v691
    %v700 = vpack.c.b16 %v694, %v693
    %v701 = vpack.c.b16 %v696, %v695
    %v702 = vpack.c.b16 %v698, %v697
    %v708 = vsel %vm113, %v667, 0
    %710 = vmatprep.subr.bf16.mxu0 0
    %711 = vmatpush1.bf16.msra.mxu0 %v699
    %712 = vmatprep.subr.bf16.mxu0 0
    %713 = vmatpush1.bf16.msra.mxu0 %v700
    %714 = vmatprep.subr.bf16.mxu0 0
    %715 = vmatpush1.bf16.msra.mxu0 %v701
    %716 = vmatprep.subr.bf16.mxu0 0
    %717 = vmatpush1.bf16.msra.mxu0 %v702
    %718 = vmatprep.subr.bf16.mxu0 0
    %719 = vmatpush1.bf16.msra.mxu0 0
    %720 = vmatprep.subr.bf16.mxu0 0
    %721 = vmatpush1.bf16.msra.mxu0 0
    %722 = vmatprep.subr.bf16.mxu0 0
    %723 = vmatpush1.bf16.msra.mxu0 0
    %724 = vmatprep.subr.bf16.mxu0 0
    %725 = vmatpush1.bf16.msra.mxu0 0
    %726 = vmatprep.subr.bf16.mxu0 0
    %727 = vmatpush1.bf16.msra.mxu0 0
    %728 = vmatprep.subr.bf16.mxu0 0
    %729 = vmatpush1.bf16.msra.mxu0 0
    %730 = vmatprep.subr.bf16.mxu0 0
    %731 = vmatpush1.bf16.msra.mxu0 0
    %732 = vmatprep.subr.bf16.mxu0 0
    %733 = vmatpush1.bf16.msra.mxu0 0
    %734 = vmatprep.subr.bf16.mxu0 0
    %735 = vmatpush1.bf16.msra.mxu0 0
    %736 = vmatprep.subr.bf16.mxu0 0
    %737 = vmatpush1.bf16.msra.mxu0 0
    %738 = vmatprep.subr.bf16.mxu0 0
    %739 = vmatpush1.bf16.msra.mxu0 0
    %740 = vmatprep.subr.bf16.mxu0 0
    %741 = vmatpush1.bf16.msra.mxu0 0
    %742 = vmatprep.mubr.bf16.mxu0 0
    %743 = vmatmul.mubr.bf16.gmra.mrb[0].mxu0 %v708
    %v744 = vpop.f32.mrb[0].mxu0
    %v745 = vadd.f32 %v681, %v744
    %v746 = vpop.f32.mrb[0].mxu0
    %v747 = vpop.f32.mrb[0].mxu0
    %v748 = vpop.f32.mrb[0].mxu0
    %749 = vdwg.mxu0
    %750 = vst [vmem:[#allocation2] sm:$0xff] %v745
    // Predicated region
    $region30: #{tpu_custom_call.1} parent=1 // pred_check
      _
    $region31: #{tpu_custom_call.1} parent=1 // pred_check_branch
      %752 = sbr.rel (0) target = $region33
    $region32: #{tpu_custom_call.1} parent=1 // pred_region
      %s754 = ssub.s32 128, 128
      %755 = vsyncadd [#allocation3], %s754
      %s757 = sshll.u32 [#allocation2], 4
      %s758 = int_to_ptr.vmem [resolvable:$true] %s757
      %760 = dma.vmem_to_hbm [thread:$0]  %s758, 128, %s7, [#allocation3]
    $region33: #{tpu_custom_call.1} parent=1 // pred_fallthru
      _
    // Predicated region
    $region34: #{tpu_custom_call.1} parent=1 // pred_check
      _
    $region35: #{tpu_custom_call.1} parent=1 // pred_check_branch
      %762 = sbr.rel (0) target = $region37
    $region36: #{tpu_custom_call.1} parent=1 // pred_region
      %763 = dma.done [#allocation3], 128
    $region37: #{tpu_custom_call.1} parent=1 // pred_fallthru
      _
    %764 = vsyncpa [#allocation3], 1

</llo_original>
